<compile_context>
chip_gen: v5e
topology: v5e:2x2
jax: 0.10.0
libtpu: 0.0.40
codegen_flags: <defaults>
</compile_context>

<pallas_src>
import functools

import jax
import jax.numpy as jnp
from jax.experimental import pallas as pl
from jax.experimental.pallas import tpu as pltpu

_LANE = 128
_K_SINGLE_MAX = 4096  # keep a single K step (tk == K) up to this depth


def _round_up(x, m):
    return (x + m - 1) // m * m


def _vmem_capacity_bytes():
    try:
        info = pltpu.get_tpu_info()
        cap = getattr(info, "vmem_capacity_bytes", None)
        if cap:
            return int(cap)
    except Exception:
        pass
    return 64 * 1024 * 1024  # safe default (v7x-sized)


def _plan(M, Kp, Np, x_isz, w_isz, o_isz, row_align, budget):
    """Pick (tm, tn, tk, Mp). Np is a multiple of 128; Kp a multiple of 512 if > 4096."""
    if Kp <= _K_SINGLE_MAX:
        tk_cands = [Kp]
    else:
        tk_cands = [c for c in (4096, 2048, 1024, 512) if Kp % c == 0] or [512]
    tn_cands = [Np] + [c for c in (4096, 2048, 1024, 512, 256, 128)
                       if c < Np and Np % c == 0]

    ki = ti = 0
    tk, tn = tk_cands[0], tn_cands[0]
    # Shrink the weight panel (tn first, then tk) until its double-buffered
    # footprint fits half the VMEM budget.
    while 2 * tk * tn * w_isz > budget // 2:
        if ti + 1 < len(tn_cands):
            ti += 1
            tn = tn_cands[ti]
        elif ki + 1 < len(tk_cands):
            ki += 1
            tk = tk_cands[ki]
        else:
            break

    multi_k = (Kp // tk) > 1
    per_row = 2 * tk * x_isz + 2 * tn * o_isz + (4 * tn if multi_k else 0)
    remaining = max(budget - 2 * tk * tn * w_isz, per_row * row_align)
    tm_max = max(row_align, remaining // per_row)

    if M <= min(tm_max, 1024):
        # Full-dim row block: no row padding, no alignment constraint.
        tm, Mp = M, M
    else:
        tm = min(512, (tm_max // row_align) * row_align)
        tm = max(tm, row_align)
        Mp = _round_up(M, tm)
    return tm, tn, tk, Mp


# ---------------------------------------------------------------------------
# Kernels
# ---------------------------------------------------------------------------

def _temporal_single_k_kernel(x_ref, w_ref, *rest, inv_q, has_bias, op_dtype):
    """Single K step: dot + epilogue straight to the output tile (no scratch)."""
    if has_bias:
        b_ref, o_ref = rest
    else:
        (o_ref,) = rest
    x = x_ref[...]
    if op_dtype is not None and x.dtype != op_dtype:
        x = x.astype(op_dtype)
    acc = jnp.dot(x, w_ref[...], preferred_element_type=jnp.float32)
    if has_bias:
        acc = acc + b_ref[...]
    if inv_q != 1.0:
        acc = acc * inv_q
    o_ref[...] = acc.astype(o_ref.dtype)


def _temporal_multi_k_kernel(x_ref, w_ref, *rest, inv_q, has_bias, op_dtype):
    """Multiple K steps: first partial written directly, last fused into epilogue."""
    if has_bias:
        b_ref, o_ref, acc_ref = rest
    else:
        o_ref, acc_ref = rest
        b_ref = None

    k = pl.program_id(2)
    nk = pl.num_programs(2)

    x = x_ref[...]
    if op_dtype is not None and x.dtype != op_dtype:
        x = x.astype(op_dtype)
    partial = jnp.dot(x, w_ref[...], preferred_element_type=jnp.float32)

    @pl.when(k == 0)
    def _():
        acc_ref[...] = partial

    @pl.when(jnp.logical_and(k > 0, k < nk - 1))
    def _():
        acc_ref[...] += partial

    @pl.when(k == nk - 1)
    def _():
        acc = acc_ref[...] + partial
        if has_bias:
            acc = acc + b_ref[...]
        if inv_q != 1.0:
            acc = acc * inv_q
        o_ref[...] = acc.astype(o_ref.dtype)


# ---------------------------------------------------------------------------
# Wrapper
# ---------------------------------------------------------------------------

def prepare_temporal_params(weight1, bias=None, Q=1, compute_dtype=None):
    """One-time parameter preparation (amortized across all forward calls).

    weight1: (out_features, in_features), bias: (out_features,) or None.
    compute_dtype: e.g. jnp.bfloat16 to store the weight in bf16 (f32 accumulation;
                   the x tile is cast in-kernel, never in the wrapper).
    """
    N, K = weight1.shape
    Np = _round_up(N, _LANE)
    Kp = K if K <= _K_SINGLE_MAX else _round_up(K, 512)

    wt = weight1.T  # (K, N): plain (tm,tk)x(tk,tn) matmul in the kernel, no XLU transpose
    if compute_dtype is not None:
        wt = wt.astype(compute_dtype)
    if (Kp, Np) != (K, N):
        wt = jnp.pad(wt, ((0, Kp - K), (0, Np - N)))

    b2d = None
    if bias is not None:
        b = bias.astype(jnp.float32)
        if Np != N:
            b = jnp.pad(b, (0, Np - N))
        b2d = b.reshape(1, Np)

    return dict(wt=jnp.asarray(wt), bias=b2d, inv_q=1.0 / float(Q),
                in_features=K, out_features=N)


def temporal_forward(x, params):
    """out = (x @ weight1.T + bias) / Q, computed with a tiled Pallas matmul."""
    wt = params["wt"]
    b2d = params["bias"]
    inv_q = params["inv_q"]
    N = params["out_features"]
    K = params["in_features"]

    M, Kx = x.shape
    assert Kx == K, "input_features mismatch"
    Kp, Np = wt.shape
    has_bias = b2d is not None

    x_isz = x.dtype.itemsize
    w_isz = wt.dtype.itemsize
    o_isz = x.dtype.itemsize
    bf16_ops = wt.dtype == jnp.bfloat16
    row_align = 16 if bf16_ops else 8

    vmem_cap = _vmem_capacity_bytes()
    budget = int(vmem_cap * 0.55)

    tm, tn, tk, Mp = _plan(M, Kp, Np, x_isz, w_isz, o_isz, row_align, budget)

    xp = x
    if (Mp, Kp) != (M, K):  # only touch x when padding is actually required
        xp = jnp.pad(x, ((0, Mp - M), (0, Kp - K)))

    gm, gn, gk = Mp // tm, Np // tn, Kp // tk
    op_dtype = wt.dtype if wt.dtype != x.dtype else None

    in_specs = [
        pl.BlockSpec((tm, tk), lambda i, j, k: (i, k)),  # x tile
        pl.BlockSpec((tk, tn), lambda i, j, k: (k, j)),  # weight (K,N) panel;
                                                         # constant index when gn==gk==1
                                                         # -> DMA'd once (resident)
    ]
    args = [xp, wt]
    if has_bias:
        in_specs.append(pl.BlockSpec((1, tn), lambda i, j, k: (0, j)))
        args.append(b2d)

    if gk == 1:
        kernel = functools.partial(_temporal_single_k_kernel, inv_q=inv_q,
                                   has_bias=has_bias, op_dtype=op_dtype)
        scratch_shapes = []
    else:
        kernel = functools.partial(_temporal_multi_k_kernel, inv_q=inv_q,
                                   has_bias=has_bias, op_dtype=op_dtype)
        scratch_shapes = [pltpu.VMEM((tm, tn), jnp.float32)]

    footprint = (2 * tk * tn * w_isz + 2 * tm * tk * x_isz + 2 * tm * tn * o_isz
                 + (2 * tn * 4 if has_bias else 0)
                 + (tm * tn * 4 if gk > 1 else 0))
    vmem_limit = min(int(vmem_cap * 0.85),
                     max(footprint + footprint // 2, 32 * 1024 * 1024))

    out = pl.pallas_call(
        kernel,
        out_shape=jax.ShapeDtypeStruct((Mp, Np), x.dtype),
        grid_spec=pltpu.PrefetchScalarGridSpec(
            num_scalar_prefetch=0,
            grid=(gm, gn, gk),
            in_specs=in_specs,
            out_specs=pl.BlockSpec((tm, tn), lambda i, j, k: (i, j)),
            scratch_shapes=scratch_shapes,
        ),
        compiler_params=pltpu.CompilerParams(
            dimension_semantics=("parallel", "parallel", "arbitrary"),
            vmem_limit_bytes=int(vmem_limit)),
    )(*args)

    if (Mp, Np) != (M, N):
        out = out[:M, :N]
    return out


def init_temporal_params(key, input_features, output_features, bias=False):
    """Matches the PyTorch init: weight1 ~ Normal(0.5, 0.005); bias ~ U(-0.1, 0.1)."""
    kw, kb = jax.random.split(key)
    weight1 = 0.5 + 0.005 * jax.random.normal(
        kw, (output_features, input_features), dtype=jnp.float32)
    b = None
    if bias:
        b = jax.random.uniform(kb, (output_features,), dtype=jnp.float32,
                               minval=-0.1, maxval=0.1)
    return weight1, b


if __name__ == "__main__":
    key = jax.random.PRNGKey(0)
    k_x, k_p = jax.random.split(key)

    batch = 16
    input_features = 32
    output_features = 16

    x = jax.random.normal(k_x, (batch, input_features), dtype=jnp.float32)

    # 1) Default module config: bias=False, Q=1, f32.
    weight1, bias_none = init_temporal_params(
        k_p, input_features, output_features, bias=False)
    params = prepare_temporal_params(weight1, bias_none, Q=1)
    out = jax.block_until_ready(temporal_forward(x, params))
    ref = x @ weight1.T
    assert out.shape == (batch, output_features)
    assert jnp.allclose(out, ref, atol=1e-4, rtol=1e-4)

    # 2) bias=True, Q=4 exercises the bias / scale epilogue.
    weight1_b, bias_b = init_temporal_params(
        k_p, input_features, output_features, bias=True)
    params_b = prepare_temporal_params(weight1_b, bias_b, Q=4)
    out_b = jax.block_until_ready(temporal_forward(x, params_b))
    ref_b = (x @ weight1_b.T + bias_b) / 4.0
    assert jnp.allclose(out_b, ref_b, atol=1e-4, rtol=1e-4)

    # 3) bf16 weight stored once at prepare time (f32 accumulation, in-kernel x cast).
    params_bf16 = prepare_temporal_params(weight1, bias_none, Q=1,
                                          compute_dtype=jnp.bfloat16)
    out_bf16 = jax.block_until_ready(temporal_forward(x, params_bf16))
    assert jnp.allclose(out_bf16, ref, atol=2e-1, rtol=5e-2)

    print("KERNEL_OK")
</pallas_src>

<mosaic_0001>
module attributes {stable_mosaic.version = 11 : i64} {
  func.func @_temporal_single_k_kernel(%arg0: i32, %arg1: i32, %arg2: i32, %arg3: memref<16x32xf32, #tpu.memory_space<vmem>>, %arg4: memref<32x128xf32, #tpu.memory_space<vmem>>, %arg5: memref<16x128xf32, #tpu.memory_space<vmem>>) attributes {dimension_semantics = [#tpu.dimension_semantics<parallel>, #tpu.dimension_semantics<parallel>, #tpu.dimension_semantics<arbitrary>], iteration_bounds = array<i64: 1, 1, 1>, scalar_prefetch = 0 : i64, scratch_operands = 0 : i64, tpu.core_type = #tpu.core_type<tc>, window_params = [{transform_indices = @transform_0, window_bounds = array<i64: 16, 32>}, {transform_indices = @transform_1, window_bounds = array<i64: 32, 128>}, {transform_indices = @transform_2, window_bounds = array<i64: 16, 128>}]} {
    %c0 = arith.constant 0 : index
    %c0_0 = arith.constant 0 : index
    %0 = vector.load %arg3[%c0, %c0_0] : memref<16x32xf32, #tpu.memory_space<vmem>>, vector<16x32xf32>
    %c0_1 = arith.constant 0 : index
    %c0_2 = arith.constant 0 : index
    %1 = vector.load %arg4[%c0_1, %c0_2] : memref<32x128xf32, #tpu.memory_space<vmem>>, vector<32x128xf32>
    %cst = arith.constant dense<0.000000e+00> : vector<16x128xf32>
    %2 = tpu.matmul %0, %1, %cst {dimension_numbers = #tpu.dot_dimension_numbers<[1], [0], [0], [1], [0, 0, 1, 1], [], []>} : vector<16x32xf32>, vector<32x128xf32>, vector<16x128xf32> -> vector<16x128xf32>
    %c0_3 = arith.constant 0 : index
    %c0_4 = arith.constant 0 : index
    %3 = vector.load %arg5[%c0_3, %c0_4] : memref<16x128xf32, #tpu.memory_space<vmem>>, vector<16x128xf32>
    tpu.vector_store %arg5[%c0_3, %c0_4], %2 {strides = array<i32>} : memref<16x128xf32, #tpu.memory_space<vmem>>, vector<16x128xf32>,
    return
  }
  func.func @transform_0(%arg0: i32, %arg1: i32, %arg2: i32) -> (i32, i32) {
    %c0_i32 = arith.constant 0 : i32
    return %arg0, %arg2 : i32, i32
  }
  func.func @transform_1(%arg0: i32, %arg1: i32, %arg2: i32) -> (i32, i32) {
    %c0_i32 = arith.constant 0 : i32
    return %arg2, %arg1 : i32, i32
  }
  func.func @transform_2(%arg0: i32, %arg1: i32, %arg2: i32) -> (i32, i32) {
    %c0_i32 = arith.constant 0 : i32
    return %arg0, %arg1 : i32, i32
  }
}

</mosaic_0001>

<llo_original>
// kernel: tpu_custom_call.1
$region0: #{tpu_custom_call.1}
  #allocation0 [shape = 'u32[]', space=smem, size = 0x4, offset = 0x4, fixed_abs, tag = 'smem constant byte address 0x4 - core index']
  #allocation1 [shape = 'u32[72,128]{1,0:T(1,128)}', space=vmem, size = 0x9000, scoped, tag = 'internal scratch']
  %s0 = inlined_call_operand.hbm [shape: f32[16,32], index: 0, kind: input, shape index: {}]
  %s1 = inlined_call_operand.hbm [shape: f32[32,128], index: 1, kind: input, shape index: {}]
  %s2 = inlined_call_operand.hbm [shape: f32[16,128], index: 2, kind: output, shape index: {}]
  %s3 = sld [smem:[#allocation0]]
  $region26: #{tpu_custom_call.1} parent=0
    _
  %s5 = ssub.s32 1, %s3
  %s6 = scalar_select 0, %s5, %s3
  $region1: #{tpu_custom_call.1} parent=0
    #allocation2 [shape = 'u8[8192]{0}', space=vmem, size = 0x2000, scoped, tag = 'input window, operand 0, single buffered']
    #allocation3 [shape = 's32[1]{0}', space=sflag, size = 0x4, scoped, tag = 'scoped memory for tpu_custom_call.1']
    #allocation4 [shape = 's32[1]{0}', space=sflag, size = 0x4, scoped, tag = 'scoped memory for tpu_custom_call.1']
    #allocation5 [shape = 'u8[16384]{0}', space=vmem, size = 0x4000, scoped, tag = 'input window, operand 1, single buffered']
    #allocation6 [shape = 's32[1]{0}', space=sflag, size = 0x4, scoped, tag = 'scoped memory for tpu_custom_call.1']
    #allocation7 [shape = 'u8[8192]{0}', space=vmem, size = 0x2000, scoped, tag = 'output window, operand 0, single buffered']
    %7 = vsyncpa [#allocation3], 0
    %8 = vsyncpa [#allocation6], 0
    %9 = vsyncpa [#allocation4], 0
    // Predicated region
    $region2: #{tpu_custom_call.1} parent=1 // pred_check
      _
    $region3: #{tpu_custom_call.1} parent=1 // pred_check_branch
      %11 = sbr.rel (0) target = $region5
    $region4: #{tpu_custom_call.1} parent=1 // pred_region
      %13 = vsyncadd [#allocation3], 0
      %s14 = sshll.u32 %s0, 4
      %s15 = int_to_ptr.hbm [resolvable:$true] %s14
      %s16 = sshll.u32 [#allocation2], 4
      %s17 = int_to_ptr.vmem [resolvable:$true] %s16
      %22 = dma.hbm_to_vmem [thread:$0]  %s15, 256, %s17, [#allocation3], 128, 128, 8
    $region5: #{tpu_custom_call.1} parent=1 // pred_fallthru
      _
    // Predicated region
    $region6: #{tpu_custom_call.1} parent=1 // pred_check
      _
    $region7: #{tpu_custom_call.1} parent=1 // pred_check_branch
      %24 = sbr.rel (0) target = $region9
    $region8: #{tpu_custom_call.1} parent=1 // pred_region
      %26 = vsyncadd [#allocation6], 0
      %s27 = sshll.u32 %s1, 4
      %s28 = int_to_ptr.hbm [resolvable:$true] %s27
      %s29 = sshll.u32 [#allocation5], 4
      %s30 = int_to_ptr.vmem [resolvable:$true] %s29
      %35 = dma.hbm_to_vmem [thread:$0]  %s28, 512, %s30, [#allocation6], 128, 128, 8
    $region9: #{tpu_custom_call.1} parent=1 // pred_fallthru
      _
    // Predicated region
    $region10: #{tpu_custom_call.1} parent=1 // pred_check
      _
    $region11: #{tpu_custom_call.1} parent=1 // pred_check_branch
      %37 = sbr.rel (0) target = $region13
    $region12: #{tpu_custom_call.1} parent=1 // pred_region
      %39 = dma.done [#allocation3], 256
    $region13: #{tpu_custom_call.1} parent=1 // pred_fallthru
      _
    // Predicated region
    $region14: #{tpu_custom_call.1} parent=1 // pred_check
      _
    $region15: #{tpu_custom_call.1} parent=1 // pred_check_branch
      %41 = sbr.rel (0) target = $region17
    $region16: #{tpu_custom_call.1} parent=1 // pred_region
      %43 = dma.done [#allocation6], 512
    $region17: #{tpu_custom_call.1} parent=1 // pred_fallthru
      _
    %v44 = vld [vmem:[#allocation2] sm:$0xff]
    %v45 = vld [vmem:[#allocation2 + $0x8] sm:$0xff]
    %v46 = vld [vmem:[#allocation5] sm:$0xff]
    %v47 = vld [vmem:[#allocation5 + $0x8] sm:$0xff]
    %v48 = vld [vmem:[#allocation5 + $0x10] sm:$0xff]
    %v49 = vld [vmem:[#allocation5 + $0x18] sm:$0xff]
    %vm50 = vcmask 261120
    %v52 = vsel %vm50, %v44, 0
    %v55 = vsel %vm50, %v45, 0
    %57 = vmatpush.msra.mxu0 0.0
    %58 = vmatpush.msra.mxu0 0.0
    %59 = vmatpush.msra.mxu0 0.0
    %60 = vmatpush.msra.mxu0 0.0
    %61 = vmatpush.msra.mxu0 0.0
    %62 = vmatpush.msra.mxu0 0.0
    %63 = vmatpush.msra.mxu0 0.0
    %64 = vmatpush.msra.mxu0 0.0
    %65 = vmatpush.msra.mxu0 0.0
    %66 = vmatpush.msra.mxu0 0.0
    %67 = vmatpush.msra.mxu0 0.0
    %68 = vmatpush.msra.mxu0 0.0
    %69 = vmatpush.msra.mxu0 %v49
    %70 = vmatpush.msra.mxu0 %v48
    %71 = vmatpush.msra.mxu0 %v47
    %72 = vmatpush.msra.mxu0 %v46
    %73 = vmatmul.f32.gmra.mxu0 %v52
    %v74 = vpop.f32.mrf.mxu0
    %v75 = vadd.f32 0.0, %v74
    %76 = vmatmul.f32.gmra.mxu0 %v55
    %v77 = vpop.f32.mrf.mxu0
    %v78 = vadd.f32 0.0, %v77
    %79 = vdwg.mxu0
    %80 = vst [vmem:[#allocation7] sm:$0xff] %v75
    %81 = vst [vmem:[#allocation7 + $0x8] sm:$0xff] %v78
    // Predicated region
    $region18: #{tpu_custom_call.1} parent=1 // pred_check
      _
    $region19: #{tpu_custom_call.1} parent=1 // pred_check_branch
      %83 = sbr.rel (0) target = $region21
    $region20: #{tpu_custom_call.1} parent=1 // pred_region
      %85 = vsyncadd [#allocation4], 0
      %s86 = sshll.u32 [#allocation7], 4
      %s87 = int_to_ptr.vmem [resolvable:$true] %s86
      %s88 = sshll.u32 %s2, 4
      %s89 = int_to_ptr.hbm [resolvable:$true] %s88
      %94 = dma.vmem_to_hbm [thread:$0]  %s87, 256, %s89, [#allocation4], 128, 128, 8
    $region21: #{tpu_custom_call.1} parent=1 // pred_fallthru
      _
    // Predicated region
    $region22: #{tpu_custom_call.1} parent=1 // pred_check
      _
    $region23: #{tpu_custom_call.1} parent=1 // pred_check_branch
      %96 = sbr.rel (0) target = $region25
    $region24: #{tpu_custom_call.1} parent=1 // pred_region
      %98 = dma.done [#allocation4], 256
    $region25: #{tpu_custom_call.1} parent=1 // pred_fallthru
      _
    %99 = vsyncpa [#allocation3], 1
    %100 = vsyncpa [#allocation6], 1
    %101 = vsyncpa [#allocation4], 1

</llo_original>
